<compile_context>
chip_gen: v7x
topology: tpu7x:2x2x1
jax: 0.10.0
libtpu: 0.0.40
codegen_flags: <defaults>
</compile_context>

<pallas_src>
import jax
import jax.numpy as jnp
from jax.experimental import pallas as pl
from jax.experimental.pallas import tpu as pltpu

NUM_INPUTS = 12
NUM_HIDDEN_NODES = 12
NUM_ACTIONS = 9          # len(ACTIONS)

HPAD = 16                # lane-padded hidden / output width used inside the kernel
MAX_TILE_B = 4096        # batch rows per grid step (~8 MiB double-buffered VMEM)

# bf16 weight slab (W_ROWS, HPAD): each weight starts on a 16-row boundary
# (bf16 packs 2 rows per sublane -> native sublane tile is 16 rows).
W1_OFF = 0               # rows  0..11 : W1 (12 x 12) in lanes 0..11
W2_OFF = 16              # rows 16..27 : W2 (12 x 12)
W3_OFF = 32              # rows 32..43 : W3 (12 x 9)
W_ROWS = 48

# f32 bias slab (B_ROWS, HPAD): every bias row 8-aligned (clean f32 tile starts).
B1_ROW = 0
B2_ROW = 8
B3_ROW = 16
B_ROWS = 24


def _dqnn_kernel(x_ref, w_ref, b_ref, o_ref):
    f32 = jnp.float32
    bf16 = jnp.bfloat16

    x = x_ref[...].astype(bf16)                              # (tile_b, 12)

    # Parameter slabs are VMEM-resident; static, tile-aligned slices.
    w1 = w_ref[W1_OFF:W1_OFF + NUM_INPUTS, :]                # (12, 16) bf16
    w2 = w_ref[W2_OFF:W2_OFF + HPAD, :]                      # (16, 16) bf16
    w3 = w_ref[W3_OFF:W3_OFF + HPAD, :]                      # (16, 16) bf16
    b1 = b_ref[B1_ROW:B1_ROW + 1, :]                         # (1, 16) f32
    b2 = b_ref[B2_ROW:B2_ROW + 1, :]
    b3 = b_ref[B3_ROW:B3_ROW + 1, :]

    # Three small matmuls + bias + ReLU, fully fused in VMEM/vregs.
    # Padded lanes (>= 12 / >= 9) carry exact zeros through every layer.
    h1 = jnp.maximum(jnp.dot(x, w1, preferred_element_type=f32) + b1, 0.0)
    h2 = jnp.maximum(jnp.dot(h1.astype(bf16), w2, preferred_element_type=f32) + b2, 0.0)
    out = jnp.dot(h2.astype(bf16), w3, preferred_element_type=f32) + b3
    o_ref[...] = out.astype(o_ref.dtype)                     # (tile_b, 16) store


def pack_params(w1, b1, w2, b2, w3, b3):
    """Pack params: bf16 weight slab (48, 16) + f32 bias slab (24, 16).

    Weights are stored (in_features, out_features) so the kernel computes
    y = x @ W + b (equivalent to PyTorch nn.Linear's x @ W.T + b, W: (out, in)).
    Do this once, outside the hot loop.
    """
    W = jnp.zeros((W_ROWS, HPAD), jnp.float32)
    W = W.at[W1_OFF:W1_OFF + NUM_INPUTS, :NUM_HIDDEN_NODES].set(w1)
    W = W.at[W2_OFF:W2_OFF + NUM_HIDDEN_NODES, :NUM_HIDDEN_NODES].set(w2)
    W = W.at[W3_OFF:W3_OFF + NUM_HIDDEN_NODES, :NUM_ACTIONS].set(w3)

    B = jnp.zeros((B_ROWS, HPAD), jnp.float32)
    B = B.at[B1_ROW, :NUM_HIDDEN_NODES].set(b1)
    B = B.at[B2_ROW, :NUM_HIDDEN_NODES].set(b2)
    B = B.at[B3_ROW, :NUM_ACTIONS].set(b3)
    return W.astype(jnp.bfloat16), B


def _round_up(n, m):
    return ((n + m - 1) // m) * m


@jax.jit
def deep_qnn_forward(x, w_slab, b_slab):
    """x: (B, 12) f32, w_slab: (48, 16) bf16, b_slab: (24, 16) f32 -> (B, 9) f32."""
    B = x.shape[0]
    # Big tiles to amortize per-step overhead, but keep >= 2 grid steps when
    # possible so both TensorCores are used on v7x (grid axis is "parallel").
    tile_b = min(MAX_TILE_B, _round_up(max(1, -(-B // 2)), 8))
    grid = (pl.cdiv(B, tile_b),)

    cost = pl.CostEstimate(
        flops=2 * B * (NUM_INPUTS * HPAD + 2 * HPAD * HPAD),
        transcendentals=0,
        bytes_accessed=B * (NUM_INPUTS + HPAD) * 4 + W_ROWS * HPAD * 2 + B_ROWS * HPAD * 4,
    )

    out = pl.pallas_call(
        _dqnn_kernel,
        out_shape=jax.ShapeDtypeStruct((B, HPAD), jnp.float32),
        grid=grid,
        in_specs=[
            pl.BlockSpec((tile_b, NUM_INPUTS), lambda i: (i, 0)),
            # Constant index maps -> parameters fetched once, VMEM-resident.
            pl.BlockSpec((W_ROWS, HPAD), lambda i: (0, 0)),
            pl.BlockSpec((B_ROWS, HPAD), lambda i: (0, 0)),
        ],
        out_specs=pl.BlockSpec((tile_b, HPAD), lambda i: (i, 0)),
        compiler_params=pltpu.CompilerParams(
            dimension_semantics=("parallel",),
            vmem_limit_bytes=32 * 1024 * 1024,
        ),
        cost_estimate=cost,
    )(x, w_slab, b_slab)
    # Drop the lane padding (columns 9..15 are exactly zero).
    return out[:, :NUM_ACTIONS]


def init_params(key):
    """Deterministic init: Xavier-uniform weights, PyTorch-default uniform biases."""
    k1, k2, k3, kb1, kb2, kb3 = jax.random.split(key, 6)

    def xavier(k, fan_in, fan_out):
        limit = jnp.sqrt(6.0 / (fan_in + fan_out))
        return jax.random.uniform(k, (fan_in, fan_out), jnp.float32, -limit, limit)

    def bias(k, fan_in, fan_out):
        bound = 1.0 / jnp.sqrt(fan_in)
        return jax.random.uniform(k, (fan_out,), jnp.float32, -bound, bound)

    w1 = xavier(k1, NUM_INPUTS, NUM_HIDDEN_NODES)
    b1 = bias(kb1, NUM_INPUTS, NUM_HIDDEN_NODES)
    w2 = xavier(k2, NUM_HIDDEN_NODES, NUM_HIDDEN_NODES)
    b2 = bias(kb2, NUM_HIDDEN_NODES, NUM_HIDDEN_NODES)
    w3 = xavier(k3, NUM_HIDDEN_NODES, NUM_ACTIONS)
    b3 = bias(kb3, NUM_HIDDEN_NODES, NUM_ACTIONS)
    return w1, b1, w2, b2, w3, b3


def reference_forward_f32(x, w1, b1, w2, b2, w3, b3):
    h1 = jnp.maximum(x @ w1 + b1, 0.0)
    h2 = jnp.maximum(h1 @ w2 + b2, 0.0)
    return h2 @ w3 + b3


def reference_forward_bf16(x, w1, b1, w2, b2, w3, b3):
    """Mirrors the kernel's mixed precision: bf16 matmul operands, f32 accum/bias."""
    bf16, f32 = jnp.bfloat16, jnp.float32

    def lin(a, w, b):
        return jnp.dot(a.astype(bf16), w.astype(bf16), preferred_element_type=f32) + b

    h1 = jnp.maximum(lin(x, w1, b1), 0.0)
    h2 = jnp.maximum(lin(h1, w2, b2), 0.0)
    return lin(h2, w3, b3)


if __name__ == "__main__":
    key = jax.random.PRNGKey(0)
    k_params, k_x1, k_x2, k_x3 = jax.random.split(key, 4)

    params = init_params(k_params)
    w_slab, b_slab = pack_params(*params)

    # Small batch (single tile), non-multiple-of-8 ragged batch, and a larger
    # batch (multi-step grid with ragged last tile) to exercise every path.
    for batch, k_x in ((4, k_x1), (5, k_x3), (1000, k_x2)):
        x = jax.random.normal(k_x, (batch, NUM_INPUTS), jnp.float32)
        out = jax.block_until_ready(deep_qnn_forward(x, w_slab, b_slab))
        assert out.shape == (batch, NUM_ACTIONS), out.shape

        ref_bf16 = reference_forward_bf16(x, *params)
        ref_f32 = reference_forward_f32(x, *params)
        assert jnp.allclose(out, ref_bf16, atol=2e-3, rtol=2e-3), "mismatch vs bf16 reference"
        assert jnp.allclose(out, ref_f32, atol=1e-1, rtol=1e-1), "mismatch vs f32 reference"

    print("KERNEL_OK")
</pallas_src>

<mosaic_0001>
module attributes {stable_mosaic.version = 11 : i64} {
  func.func @_dqnn_kernel(%arg0: i32, %arg1: memref<8x12xf32, #tpu.memory_space<vmem>>, %arg2: memref<48x16xbf16, #tpu.memory_space<vmem>>, %arg3: memref<24x16xf32, #tpu.memory_space<vmem>>, %arg4: memref<8x16xf32, #tpu.memory_space<vmem>>) attributes {dimension_semantics = [#tpu.dimension_semantics<parallel>], iteration_bounds = array<i64: 1>, scalar_prefetch = 0 : i64, scratch_operands = 0 : i64, tpu.core_type = #tpu.core_type<tc>, window_params = [{transform_indices = @transform_0, window_bounds = array<i64: 8, 12>}, {pipeline_mode = #tpu.pipeline_mode<synchronous>, transform_indices = @transform_1, window_bounds = array<i64: 48, 16>}, {pipeline_mode = #tpu.pipeline_mode<synchronous>, transform_indices = @transform_2, window_bounds = array<i64: 24, 16>}, {transform_indices = @transform_3, window_bounds = array<i64: 8, 16>}]} {
    %c0 = arith.constant 0 : index
    %c0_0 = arith.constant 0 : index
    %0 = vector.load %arg1[%c0, %c0_0] : memref<8x12xf32, #tpu.memory_space<vmem>>, vector<8x12xf32>
    %1 = arith.truncf %0 : vector<8x12xf32> to vector<8x12xbf16>
    %c0_1 = arith.constant 0 : index
    %c0_2 = arith.constant 0 : index
    %2 = vector.load %arg2[%c0_1, %c0_2] : memref<48x16xbf16, #tpu.memory_space<vmem>>, vector<12x16xbf16>
    %c16 = arith.constant 16 : index
    %c0_3 = arith.constant 0 : index
    %3 = vector.load %arg2[%c16, %c0_3] : memref<48x16xbf16, #tpu.memory_space<vmem>>, vector<16x16xbf16>
    %c32 = arith.constant 32 : index
    %c0_4 = arith.constant 0 : index
    %4 = vector.load %arg2[%c32, %c0_4] : memref<48x16xbf16, #tpu.memory_space<vmem>>, vector<16x16xbf16>
    %c0_5 = arith.constant 0 : index
    %c0_6 = arith.constant 0 : index
    %5 = vector.load %arg3[%c0_5, %c0_6] : memref<24x16xf32, #tpu.memory_space<vmem>>, vector<1x16xf32>
    %c8 = arith.constant 8 : index
    %c0_7 = arith.constant 0 : index
    %6 = vector.load %arg3[%c8, %c0_7] : memref<24x16xf32, #tpu.memory_space<vmem>>, vector<1x16xf32>
    %c16_8 = arith.constant 16 : index
    %c0_9 = arith.constant 0 : index
    %7 = vector.load %arg3[%c16_8, %c0_9] : memref<24x16xf32, #tpu.memory_space<vmem>>, vector<1x16xf32>
    %cst = arith.constant dense<0.000000e+00> : vector<8x16xf32>
    %8 = tpu.matmul %1, %2, %cst {dimension_numbers = #tpu.dot_dimension_numbers<[1], [0], [0], [1], [0, 0, 1, 1], [], []>} : vector<8x12xbf16>, vector<12x16xbf16>, vector<8x16xf32> -> vector<8x16xf32>
    %9 = vector.broadcast %5 : vector<1x16xf32> to vector<8x16xf32>
    %10 = arith.addf %8, %9 : vector<8x16xf32>
    %cst_10 = arith.constant 0.000000e+00 : f32
    %11 = vector.broadcast %cst_10 : f32 to vector<8x16xf32>
    %12 = arith.maximumf %10, %11 : vector<8x16xf32>
    %13 = arith.truncf %12 : vector<8x16xf32> to vector<8x16xbf16>
    %cst_11 = arith.constant dense<0.000000e+00> : vector<8x16xf32>
    %14 = tpu.matmul %13, %3, %cst_11 {dimension_numbers = #tpu.dot_dimension_numbers<[1], [0], [0], [1], [0, 0, 1, 1], [], []>} : vector<8x16xbf16>, vector<16x16xbf16>, vector<8x16xf32> -> vector<8x16xf32>
    %15 = vector.broadcast %6 : vector<1x16xf32> to vector<8x16xf32>
    %16 = arith.addf %14, %15 : vector<8x16xf32>
    %cst_12 = arith.constant 0.000000e+00 : f32
    %17 = vector.broadcast %cst_12 : f32 to vector<8x16xf32>
    %18 = arith.maximumf %16, %17 : vector<8x16xf32>
    %19 = arith.truncf %18 : vector<8x16xf32> to vector<8x16xbf16>
    %cst_13 = arith.constant dense<0.000000e+00> : vector<8x16xf32>
    %20 = tpu.matmul %19, %4, %cst_13 {dimension_numbers = #tpu.dot_dimension_numbers<[1], [0], [0], [1], [0, 0, 1, 1], [], []>} : vector<8x16xbf16>, vector<16x16xbf16>, vector<8x16xf32> -> vector<8x16xf32>
    %21 = vector.broadcast %7 : vector<1x16xf32> to vector<8x16xf32>
    %22 = arith.addf %20, %21 : vector<8x16xf32>
    %c0_14 = arith.constant 0 : index
    %c0_15 = arith.constant 0 : index
    %23 = vector.load %arg4[%c0_14, %c0_15] : memref<8x16xf32, #tpu.memory_space<vmem>>, vector<8x16xf32>
    tpu.vector_store %arg4[%c0_14, %c0_15], %22 {strides = array<i32>} : memref<8x16xf32, #tpu.memory_space<vmem>>, vector<8x16xf32>,
    return
  }
  func.func @transform_0(%arg0: i32) -> (i32, i32) {
    %c0_i32 = arith.constant 0 : i32
    %c0_i32_0 = arith.constant 0 : i32
    return %arg0, %c0_i32 : i32, i32
  }
  func.func @transform_1(%arg0: i32) -> (i32, i32) {
    %c0_i32 = arith.constant 0 : i32
    %c0_i32_0 = arith.constant 0 : i32
    %c0_i32_1 = arith.constant 0 : i32
    return %c0_i32, %c0_i32_0 : i32, i32
  }
  func.func @transform_2(%arg0: i32) -> (i32, i32) {
    %c0_i32 = arith.constant 0 : i32
    %c0_i32_0 = arith.constant 0 : i32
    %c0_i32_1 = arith.constant 0 : i32
    return %c0_i32, %c0_i32_0 : i32, i32
  }
  func.func @transform_3(%arg0: i32) -> (i32, i32) {
    %c0_i32 = arith.constant 0 : i32
    %c0_i32_0 = arith.constant 0 : i32
    return %arg0, %c0_i32 : i32, i32
  }
}

</mosaic_0001>

<llo_original>
// kernel: deep_qnn_forward.1
$region0: #{deep_qnn_forward.1}
  #allocation0 [shape = 'u32[]', space=smem, size = 0x4, offset = 0x4, fixed_abs, tag = 'smem constant byte address 0x4 - core index']
  #allocation1 [shape = 'u32[144,128]{1,0:T(1,128)}', space=vmem, size = 0x12000, scoped, tag = 'internal scratch']
  %s0 = inlined_call_operand.vmem [shape: f32[4,12], index: 0, kind: input, shape index: {}]
  %s1 = inlined_call_operand.vmem [shape: bf16[48,16], index: 1, kind: input, shape index: {}]
  %s2 = inlined_call_operand.vmem [shape: f32[24,16], index: 2, kind: input, shape index: {}]
  %s3 = inlined_call_operand.hbm [shape: f32[4,16], index: 3, kind: output, shape index: {}]
  %s4 = sld [smem:[#allocation0]]
  $region22: #{deep_qnn_forward.1} parent=0
    _
  %s6 = ssub.s32 1, %s4
  %s7 = scalar_select 0, %s6, %s4
  $region1: #{deep_qnn_forward.1} parent=0
    #allocation2 [shape = 'u8[4096]{0}', space=vmem, size = 0x1000, scoped, tag = 'output window, operand 0, single buffered']
    #allocation3 [shape = 's32[1]{0}', space=sflag, size = 0x4, scoped, tag = 'scoped memory for deep_qnn_forward.1']
    %8 = vsyncpa [#allocation3], 0
    // Predicated region
    $region2: #{deep_qnn_forward.1} parent=1 // pred_check
      _
    $region3: #{deep_qnn_forward.1} parent=1 // pred_check_branch
      %10 = sbr.rel (0) target = $region5
    $region4: #{deep_qnn_forward.1} parent=1 // pred_region
      _
    $region5: #{deep_qnn_forward.1} parent=1 // pred_fallthru
      _
    // Predicated region
    $region6: #{deep_qnn_forward.1} parent=1 // pred_check
      _
    $region7: #{deep_qnn_forward.1} parent=1 // pred_check_branch
      %12 = sbr.rel (0) target = $region9
    $region8: #{deep_qnn_forward.1} parent=1 // pred_region
      _
    $region9: #{deep_qnn_forward.1} parent=1 // pred_fallthru
      _
    // Predicated region
    $region10: #{deep_qnn_forward.1} parent=1 // pred_check
      _
    $region11: #{deep_qnn_forward.1} parent=1 // pred_check_branch
      %14 = sbr.rel (0) target = $region13
    $region12: #{deep_qnn_forward.1} parent=1 // pred_region
      _
    $region13: #{deep_qnn_forward.1} parent=1 // pred_fallthru
      _
    %v16 = vld [vmem:[%s0] sm:$0xff]
    %v17 = vpack.c.bf16 %v16, %v16
    %v18 = vld [vmem:[%s1] sm:$0xf]
    %v19 = vld [vmem:[%s1 + $0x4] sm:$0x3]
    %v20 = vld [vmem:[%s1 + $0x8] sm:$0xf]
    %v21 = vld [vmem:[%s1 + $0xc] sm:$0xf]
    %v22 = vld [vmem:[%s1 + $0x10] sm:$0xf]
    %v23 = vld [vmem:[%s1 + $0x14] sm:$0xf]
    %v24 = vld [vmem:[%s2] sm:$0x1]
    %v25 = vld [vmem:[%s2 + $0x8] sm:$0x1]
    %v26 = vld [vmem:[%s2 + $0x10] sm:$0x1]
    %v27 = vlaneseq
    %v28 = vshrl.u32 %v27, 7
    %v29 = vsub.s32 0, %v28
    %v30 = vrot.slane %v24, %v29
    %v33 = vunpack.c.l.b16 %v18
    %v34 = vunpack.c.l.b16 %v19
    %v35 = vpack.c.b16 %v34, %v33
    %vm36 = vcmask 97280
    %v38 = vsel %vm36, %v17, 0
    %vm40 = vcmask 1045504
    %v42 = vsel %vm40, %v35, 0
    %44 = vmatprep.subr.bf16.mxu0 0
    %45 = vmatpush1.bf16.msra.mxu0 %v42
    %46 = vmatprep.subr.bf16.mxu0 0
    %47 = vmatpush1.bf16.msra.mxu0 0
    %48 = vmatprep.subr.bf16.mxu0 0
    %49 = vmatpush1.bf16.msra.mxu0 0
    %50 = vmatprep.subr.bf16.mxu0 0
    %51 = vmatpush1.bf16.msra.mxu0 0
    %52 = vmatprep.subr.bf16.mxu0 0
    %53 = vmatpush1.bf16.msra.mxu0 0
    %54 = vmatprep.subr.bf16.mxu0 0
    %55 = vmatpush1.bf16.msra.mxu0 0
    %56 = vmatprep.subr.bf16.mxu0 0
    %57 = vmatpush1.bf16.msra.mxu0 0
    %58 = vmatprep.subr.bf16.mxu0 0
    %59 = vmatpush1.bf16.msra.mxu0 0
    %60 = vmatprep.subr.bf16.mxu0 0
    %61 = vmatpush1.bf16.msra.mxu0 0
    %62 = vmatprep.subr.bf16.mxu0 0
    %63 = vmatpush1.bf16.msra.mxu0 0
    %64 = vmatprep.subr.bf16.mxu0 0
    %65 = vmatpush1.bf16.msra.mxu0 0
    %66 = vmatprep.subr.bf16.mxu0 0
    %67 = vmatpush1.bf16.msra.mxu0 0
    %68 = vmatprep.subr.bf16.mxu0 0
    %69 = vmatpush1.bf16.msra.mxu0 0
    %70 = vmatprep.subr.bf16.mxu0 0
    %71 = vmatpush1.bf16.msra.mxu0 0
    %72 = vmatprep.subr.bf16.mxu0 0
    %73 = vmatpush1.bf16.msra.mxu0 0
    %74 = vmatprep.subr.bf16.mxu0 0
    %75 = vmatpush1.bf16.msra.mxu0 0
    %76 = vmatprep.mubr.bf16.mxu0 0
    %77 = vmatmul.mubr.bf16.gmra.mrb[0].mxu0 %v38
    %v78 = vpop.f32.mrb[0].mxu0
    %v79 = vadd.f32 %v30, %v78
    %v80 = vpop.f32.mrb[0].mxu0
    %v81 = vpop.f32.mrb[0].mxu0
    %v82 = vpop.f32.mrb[0].mxu0
    %83 = vdwg.mxu0
    %v84 = vmax.f32 %v79, 0.0
    %v85 = vpack.c.bf16 %v84, %v84
    %v86 = vlaneseq
    %v87 = vshrl.u32 %v86, 7
    %v88 = vsub.s32 0, %v87
    %v89 = vrot.slane %v25, %v88
    %v92 = vunpack.c.l.b16 %v20
    %v93 = vunpack.c.l.b16 %v21
    %v94 = vpack.c.b16 %v93, %v92
    %vm96 = vcmask 130048
    %v98 = vsel %vm96, %v85, 0
    %100 = vmatprep.subr.bf16.mxu0 0
    %101 = vmatpush1.bf16.msra.mxu0 %v94
    %102 = vmatprep.subr.bf16.mxu0 0
    %103 = vmatpush1.bf16.msra.mxu0 0
    %104 = vmatprep.subr.bf16.mxu0 0
    %105 = vmatpush1.bf16.msra.mxu0 0
    %106 = vmatprep.subr.bf16.mxu0 0
    %107 = vmatpush1.bf16.msra.mxu0 0
    %108 = vmatprep.subr.bf16.mxu0 0
    %109 = vmatpush1.bf16.msra.mxu0 0
    %110 = vmatprep.subr.bf16.mxu0 0
    %111 = vmatpush1.bf16.msra.mxu0 0
    %112 = vmatprep.subr.bf16.mxu0 0
    %113 = vmatpush1.bf16.msra.mxu0 0
    %114 = vmatprep.subr.bf16.mxu0 0
    %115 = vmatpush1.bf16.msra.mxu0 0
    %116 = vmatprep.subr.bf16.mxu0 0
    %117 = vmatpush1.bf16.msra.mxu0 0
    %118 = vmatprep.subr.bf16.mxu0 0
    %119 = vmatpush1.bf16.msra.mxu0 0
    %120 = vmatprep.subr.bf16.mxu0 0
    %121 = vmatpush1.bf16.msra.mxu0 0
    %122 = vmatprep.subr.bf16.mxu0 0
    %123 = vmatpush1.bf16.msra.mxu0 0
    %124 = vmatprep.subr.bf16.mxu0 0
    %125 = vmatpush1.bf16.msra.mxu0 0
    %126 = vmatprep.subr.bf16.mxu0 0
    %127 = vmatpush1.bf16.msra.mxu0 0
    %128 = vmatprep.subr.bf16.mxu0 0
    %129 = vmatpush1.bf16.msra.mxu0 0
    %130 = vmatprep.subr.bf16.mxu0 0
    %131 = vmatpush1.bf16.msra.mxu0 0
    %132 = vmatprep.mubr.bf16.mxu0 0
    %133 = vmatmul.mubr.bf16.gmra.mrb[0].mxu0 %v98
    %v134 = vpop.f32.mrb[0].mxu0
    %v135 = vadd.f32 %v89, %v134
    %v136 = vpop.f32.mrb[0].mxu0
    %v137 = vpop.f32.mrb[0].mxu0
    %v138 = vpop.f32.mrb[0].mxu0
    %139 = vdwg.mxu0
    %v140 = vmax.f32 %v135, 0.0
    %v141 = vpack.c.bf16 %v140, %v140
    %v142 = vlaneseq
    %v143 = vshrl.u32 %v142, 7
    %v144 = vsub.s32 0, %v143
    %v145 = vrot.slane %v26, %v144
    %v148 = vunpack.c.l.b16 %v22
    %v149 = vunpack.c.l.b16 %v23
    %v150 = vpack.c.b16 %v149, %v148
    %v153 = vsel %vm96, %v141, 0
    %155 = vmatprep.subr.bf16.mxu0 0
    %156 = vmatpush1.bf16.msra.mxu0 %v150
    %157 = vmatprep.subr.bf16.mxu0 0
    %158 = vmatpush1.bf16.msra.mxu0 0
    %159 = vmatprep.subr.bf16.mxu0 0
    %160 = vmatpush1.bf16.msra.mxu0 0
    %161 = vmatprep.subr.bf16.mxu0 0
    %162 = vmatpush1.bf16.msra.mxu0 0
    %163 = vmatprep.subr.bf16.mxu0 0
    %164 = vmatpush1.bf16.msra.mxu0 0
    %165 = vmatprep.subr.bf16.mxu0 0
    %166 = vmatpush1.bf16.msra.mxu0 0
    %167 = vmatprep.subr.bf16.mxu0 0
    %168 = vmatpush1.bf16.msra.mxu0 0
    %169 = vmatprep.subr.bf16.mxu0 0
    %170 = vmatpush1.bf16.msra.mxu0 0
    %171 = vmatprep.subr.bf16.mxu0 0
    %172 = vmatpush1.bf16.msra.mxu0 0
    %173 = vmatprep.subr.bf16.mxu0 0
    %174 = vmatpush1.bf16.msra.mxu0 0
    %175 = vmatprep.subr.bf16.mxu0 0
    %176 = vmatpush1.bf16.msra.mxu0 0
    %177 = vmatprep.subr.bf16.mxu0 0
    %178 = vmatpush1.bf16.msra.mxu0 0
    %179 = vmatprep.subr.bf16.mxu0 0
    %180 = vmatpush1.bf16.msra.mxu0 0
    %181 = vmatprep.subr.bf16.mxu0 0
    %182 = vmatpush1.bf16.msra.mxu0 0
    %183 = vmatprep.subr.bf16.mxu0 0
    %184 = vmatpush1.bf16.msra.mxu0 0
    %185 = vmatprep.subr.bf16.mxu0 0
    %186 = vmatpush1.bf16.msra.mxu0 0
    %187 = vmatprep.mubr.bf16.mxu0 0
    %188 = vmatmul.mubr.bf16.gmra.mrb[0].mxu0 %v153
    %v189 = vpop.f32.mrb[0].mxu0
    %v190 = vadd.f32 %v145, %v189
    %v191 = vpop.f32.mrb[0].mxu0
    %v192 = vpop.f32.mrb[0].mxu0
    %v193 = vpop.f32.mrb[0].mxu0
    %194 = vdwg.mxu0
    %195 = vst.msk [vmem:[#allocation2] sm:$0xff] %vm96, %v190
    // Predicated region
    $region14: #{deep_qnn_forward.1} parent=1 // pred_check
      _
    $region15: #{deep_qnn_forward.1} parent=1 // pred_check_branch
      %197 = sbr.rel (0) target = $region17
    $region16: #{deep_qnn_forward.1} parent=1 // pred_region
      %s199 = ssub.s32 128, 64
      %200 = vsyncadd [#allocation3], %s199
      %s201 = sshll.u32 [#allocation2], 4
      %s202 = int_to_ptr.vmem [resolvable:$true] %s201
      %207 = dma.vmem_to_hbm [thread:$0]  %s202, 64, %s3, [#allocation3], 64, 64, 4
    $region17: #{deep_qnn_forward.1} parent=1 // pred_fallthru
      _
    // Predicated region
    $region18: #{deep_qnn_forward.1} parent=1 // pred_check
      _
    $region19: #{deep_qnn_forward.1} parent=1 // pred_check_branch
      %209 = sbr.rel (0) target = $region21
    $region20: #{deep_qnn_forward.1} parent=1 // pred_region
      %210 = dma.done [#allocation3], 128
    $region21: #{deep_qnn_forward.1} parent=1 // pred_fallthru
      _
    %211 = vsyncpa [#allocation3], 1

</llo_original>
